<compile_context>
chip_gen: v6e
topology: v6e:2x2x1
jax: 0.10.0
libtpu: 0.0.40
codegen_flags: <defaults>
</compile_context>

<pallas_src>
import jax
import jax.numpy as jnp
from jax.experimental import pallas as pl
from jax.experimental.pallas import tpu as pltpu

_LANE = 128                     # vreg lane width
_MAX_COLS = 2048                # lane-dense slab width cap (multiple of 128)
_TARGET_TILE_BYTES = 4 << 20    # ~4 MiB input tile per grid step
_MIN_GRID = 4                   # keep >= 4 row-tiles when possible (pipelining / v7x TC split)
_MIN_KERNEL_BYTES = 1 << 20     # below this a fused XLA multiply beats a standalone kernel


def _zerogate_kernel(a_ref, h_ref, o_ref):
    # a_ref: (1,) float32 scalar parameter in SMEM.
    # h_ref / o_ref: (tile_rows, cols) lane-dense tiles in VMEM.
    a = a_ref[0]
    o_ref[...] = (a * h_ref[...].astype(jnp.float32)).astype(o_ref.dtype)


def _pick_cols(n):
    """Largest multiple of 128 that divides n (capped at _MAX_COLS); 0 if none."""
    c = (min(n, _MAX_COLS) // _LANE) * _LANE
    while c >= _LANE:
        if n % c == 0:
            return c
        c -= _LANE
    return 0


def zero_gate(h, a, *, out_dtype=None, donate_h=False, force_kernel=False):
    """out = a * h, `a` a scalar parameter (matches nn.Parameter(torch.tensor(0.0)))."""
    orig_shape = h.shape
    in_dtype = h.dtype
    # PyTorch promotes (float32 parameter) * h.dtype; mirror that by default.
    default_out = jnp.result_type(jnp.float32, in_dtype)
    out_dtype = default_out if out_dtype is None else jax.dtypes.canonicalize_dtype(out_dtype)

    n = h.size
    in_itemsize = in_dtype.itemsize
    out_itemsize = jnp.result_type(out_dtype).itemsize

    cols = _pick_cols(n) if n else 0
    use_kernel = (
        cols > 0
        and in_itemsize <= 4
        and out_itemsize <= 4
        and (force_kernel or n * in_itemsize >= _MIN_KERNEL_BYTES)
    )
    if not use_kernel:
        # Small / unaligned / unsupported-dtype path: one fused XLA elementwise op
        # (already at the HBM roofline; no pad/slice/copy overhead).
        # TODO(synk): a masked tail tile via pltpu.store could keep the last
        # n % 128 elements in-kernel if a single fused op is ever undesirable.
        return (jnp.asarray(a, jnp.float32) * h).astype(out_dtype)

    rows = n // cols
    h2d = h.reshape(rows, cols)          # free view: cols divides n exactly

    # Sublane multiple for the narrower of in/out dtype (f32: 8, bf16: 16, i8: 32).
    sub = 32 // min(in_itemsize, out_itemsize)
    if rows <= sub:
        tile_rows = rows                 # full-extent block (allowed by tiling rule)
    else:
        target = max(sub, _TARGET_TILE_BYTES // (cols * in_itemsize))
        cap = max(sub, rows // _MIN_GRID)   # keep >= _MIN_GRID tiles when rows allow
        tile_rows = min(target, cap, rows)
        tile_rows = max(sub, (tile_rows // sub) * sub)
    grid = (pl.cdiv(rows, tile_rows),)   # ragged last tile handled by masked stores

    tile_in_bytes = tile_rows * cols * in_itemsize
    tile_out_bytes = tile_rows * cols * out_itemsize
    # 2x double-buffered input + output tiles, with headroom; fits every generation.
    vmem_limit = int(min(48 << 20, max(32 << 20, 4 * (tile_in_bytes + tile_out_bytes))))

    a_arr = jnp.asarray(a, dtype=jnp.float32).reshape(1)

    extra = {}
    if donate_h and in_dtype == out_dtype:
        # Reuse h's HBM buffer for the output (inputs are (a_arr, h2d) -> index 1).
        extra["input_output_aliases"] = {1: 0}

    out2d = pl.pallas_call(
        _zerogate_kernel,
        out_shape=jax.ShapeDtypeStruct((rows, cols), out_dtype),
        grid=grid,
        in_specs=[
            pl.BlockSpec(memory_space=pltpu.MemorySpace.SMEM),   # scalar param `a`
            pl.BlockSpec((tile_rows, cols), lambda i: (i, 0)),   # activation tile
        ],
        out_specs=pl.BlockSpec((tile_rows, cols), lambda i: (i, 0)),
        compiler_params=pltpu.CompilerParams(
            # Row-tiles are independent -> shard across TensorCores on v7x.
            dimension_semantics=("parallel",),
            vmem_limit_bytes=vmem_limit,
        ),
        cost_estimate=pl.CostEstimate(
            flops=n,
            transcendentals=0,
            bytes_accessed=n * in_itemsize + n * out_itemsize,
        ),
        **extra,
    )(a_arr, h2d)

    return out2d.reshape(orig_shape)


if __name__ == "__main__":
    key = jax.random.PRNGKey(0)

    # 1) Small NCHW input consistent with a conv-style module; force the kernel path.
    x = jax.random.normal(key, (2, 4, 16, 16), dtype=jnp.float32)
    a_param = jnp.float32(0.0)           # nn.Parameter(torch.tensor(0.0))
    out = jax.block_until_ready(zero_gate(x, a_param, force_kernel=True))
    assert out.shape == x.shape and out.dtype == x.dtype
    assert jnp.allclose(out, a_param * x, atol=0.0, rtol=0.0)

    # 2) Nonzero gate on a multi-tile input (exercises the pipelined grid).
    k1, k2 = jax.random.split(key)
    x_big = jax.random.normal(k1, (2, 64, 64, 64), dtype=jnp.float32)   # 2 MiB
    out_big = jax.block_until_ready(zero_gate(x_big, jnp.float32(0.5)))
    assert jnp.allclose(out_big, 0.5 * x_big, atol=1e-6, rtol=1e-6)

    # 3) n not divisible by 128 (2*8*14*14 = 3136) -> fused XLA fallback path.
    x_odd = jax.random.normal(k2, (2, 8, 14, 14), dtype=jnp.float32)
    out_odd = jax.block_until_ready(zero_gate(x_odd, jnp.float32(-1.25)))
    assert out_odd.shape == x_odd.shape
    assert jnp.allclose(out_odd, -1.25 * x_odd, atol=1e-6, rtol=1e-6)

    # 4) bf16 input: default keeps torch-style f32 promotion; opt-in bf16 output.
    x_bf = jax.random.normal(k2, (4, 8, 32, 32), dtype=jnp.bfloat16)
    out_f32 = jax.block_until_ready(zero_gate(x_bf, jnp.float32(2.0), force_kernel=True))
    assert out_f32.dtype == jnp.float32
    out_bf16 = jax.block_until_ready(
        zero_gate(x_bf, jnp.float32(2.0), out_dtype=jnp.bfloat16, force_kernel=True))
    assert out_bf16.dtype == jnp.bfloat16
    assert jnp.allclose(out_f32, 2.0 * x_bf.astype(jnp.float32), atol=1e-2, rtol=1e-2)

    print("KERNEL_OK")
</pallas_src>

<mosaic_0001>
module attributes {stable_mosaic.version = 11 : i64} {
  func.func @_zerogate_kernel(%arg0: i32, %arg1: memref<1xf32, #tpu.memory_space<smem>>, %arg2: memref<1x2048xf32, #tpu.memory_space<vmem>>, %arg3: memref<1x2048xf32, #tpu.memory_space<vmem>>) attributes {dimension_semantics = [#tpu.dimension_semantics<parallel>], iteration_bounds = array<i64: 1>, scalar_prefetch = 0 : i64, scratch_operands = 0 : i64, tpu.core_type = #tpu.core_type<tc>, window_params = [{transform_indices = @transform_0, window_bounds = array<i64: 1>}, {transform_indices = @transform_1, window_bounds = array<i64: 1, 2048>}, {transform_indices = @transform_2, window_bounds = array<i64: 1, 2048>}]} {
    %c0 = arith.constant 0 : index
    %0 = memref.load %arg1[%c0] : memref<1xf32, #tpu.memory_space<smem>>
    %c0_0 = arith.constant 0 : index
    %c0_1 = arith.constant 0 : index
    %1 = vector.load %arg2[%c0_0, %c0_1] : memref<1x2048xf32, #tpu.memory_space<vmem>>, vector<1x2048xf32>
    %2 = vector.broadcast %0 : f32 to vector<1x2048xf32>
    %3 = arith.mulf %2, %1 : vector<1x2048xf32>
    %c0_2 = arith.constant 0 : index
    %c0_3 = arith.constant 0 : index
    %4 = vector.load %arg3[%c0_2, %c0_3] : memref<1x2048xf32, #tpu.memory_space<vmem>>, vector<1x2048xf32>
    tpu.vector_store %arg3[%c0_2, %c0_3], %3 {strides = array<i32>} : memref<1x2048xf32, #tpu.memory_space<vmem>>, vector<1x2048xf32>,
    return
  }
  func.func @transform_0(%arg0: i32) -> i32 {
    %c0_i32 = arith.constant 0 : i32
    %c0_i32_0 = arith.constant 0 : i32
    return %c0_i32 : i32
  }
  func.func @transform_1(%arg0: i32) -> (i32, i32) {
    %c0_i32 = arith.constant 0 : i32
    %c0_i32_0 = arith.constant 0 : i32
    return %arg0, %c0_i32 : i32, i32
  }
  func.func @transform_2(%arg0: i32) -> (i32, i32) {
    %c0_i32 = arith.constant 0 : i32
    %c0_i32_0 = arith.constant 0 : i32
    return %arg0, %c0_i32 : i32, i32
  }
}

</mosaic_0001>

<llo_original>
// kernel: tpu_custom_call.1
$region0: #{tpu_custom_call.1}
  #allocation0 [shape = 'u32[]', space=smem, size = 0x4, offset = 0x4, fixed_abs, tag = 'smem constant byte address 0x4 - core index']
  #allocation1 [shape = 'u32[144,128]{1,0:T(1,128)}', space=vmem, size = 0x12000, scoped, tag = 'internal scratch']
  #allocation2 [shape = 'f32[1]{0:T(128)S(6)}', space=smem, size = 0x200, scoped, tag = 'scoped memory for tpu_custom_call.1']
  %s0 = inlined_call_operand.<no memory space> [shape: f32[1], index: 0, kind: input, shape index: {}]
  %s1 = inlined_call_operand.hbm [shape: f32[1,2048], index: 1, kind: input, shape index: {}]
  %s2 = inlined_call_operand.hbm [shape: f32[1,2048], index: 2, kind: output, shape index: {}]
  %s3 = sld [smem:[#allocation0]]
  $region22: #{tpu_custom_call.1} parent=0
    _
  %s5 = ssub.s32 1, %s3
  %s6 = scalar_select 0, %s5, %s3
  %7 = sst [smem:[#allocation2]] %s0
  $region1: #{tpu_custom_call.1} parent=0
    #allocation3 [shape = 'u8[8192]{0}', space=vmem, size = 0x2000, scoped, tag = 'input window, operand 1, single buffered']
    #allocation4 [shape = 's32[1]{0}', space=sflag, size = 0x4, scoped, tag = 'scoped memory for tpu_custom_call.1']
    #allocation5 [shape = 's32[1]{0}', space=sflag, size = 0x4, scoped, tag = 'scoped memory for tpu_custom_call.1']
    #allocation6 [shape = 'u8[8192]{0}', space=vmem, size = 0x2000, scoped, tag = 'output window, operand 0, single buffered']
    %8 = vsyncpa [#allocation4], 0
    %9 = vsyncpa [#allocation5], 0
    // Predicated region
    $region2: #{tpu_custom_call.1} parent=1 // pred_check
      _
    $region3: #{tpu_custom_call.1} parent=1 // pred_check_branch
      %11 = sbr.rel (0) target = $region5
    $region4: #{tpu_custom_call.1} parent=1 // pred_region
      _
    $region5: #{tpu_custom_call.1} parent=1 // pred_fallthru
      _
    // Predicated region
    $region6: #{tpu_custom_call.1} parent=1 // pred_check
      _
    $region7: #{tpu_custom_call.1} parent=1 // pred_check_branch
      %13 = sbr.rel (0) target = $region9
    $region8: #{tpu_custom_call.1} parent=1 // pred_region
      %s15 = ssub.s32 256, 256
      %16 = vsyncadd [#allocation4], %s15
      %s18 = sshll.u32 [#allocation3], 4
      %s19 = int_to_ptr.vmem [resolvable:$true] %s18
      %21 = dma.hbm_to_vmem [thread:$0]  %s1, 256, %s19, [#allocation4]
    $region9: #{tpu_custom_call.1} parent=1 // pred_fallthru
      _
    // Predicated region
    $region10: #{tpu_custom_call.1} parent=1 // pred_check
      _
    $region11: #{tpu_custom_call.1} parent=1 // pred_check_branch
      %23 = sbr.rel (0) target = $region13
    $region12: #{tpu_custom_call.1} parent=1 // pred_region
      %24 = dma.done [#allocation4], 256
    $region13: #{tpu_custom_call.1} parent=1 // pred_fallthru
      _
    %s25 = sld [smem:[#allocation2]]
    %v26 = vld [vmem:[#allocation3] sm:$0xff]
    %v27 = vld [vmem:[#allocation3 + $0x8] sm:$0xff]
    %v28 = vstv %s25
    %v29 = vmul.f32 %v28, %v26
    %v30 = vmul.f32 %v28, %v27
    %31 = vst [vmem:[#allocation6] sm:$0xff] %v29
    %32 = vst [vmem:[#allocation6 + $0x8] sm:$0xff] %v30
    // Predicated region
    $region14: #{tpu_custom_call.1} parent=1 // pred_check
      _
    $region15: #{tpu_custom_call.1} parent=1 // pred_check_branch
      %34 = sbr.rel (0) target = $region17
    $region16: #{tpu_custom_call.1} parent=1 // pred_region
      %s36 = ssub.s32 256, 256
      %37 = vsyncadd [#allocation5], %s36
      %s39 = sshll.u32 [#allocation6], 4
      %s40 = int_to_ptr.vmem [resolvable:$true] %s39
      %42 = dma.vmem_to_hbm [thread:$0]  %s40, 256, %s2, [#allocation5]
    $region17: #{tpu_custom_call.1} parent=1 // pred_fallthru
      _
    // Predicated region
    $region18: #{tpu_custom_call.1} parent=1 // pred_check
      _
    $region19: #{tpu_custom_call.1} parent=1 // pred_check_branch
      %44 = sbr.rel (0) target = $region21
    $region20: #{tpu_custom_call.1} parent=1 // pred_region
      %45 = dma.done [#allocation5], 256
    $region21: #{tpu_custom_call.1} parent=1 // pred_fallthru
      _
    %46 = vsyncpa [#allocation4], 1
    %47 = vsyncpa [#allocation5], 1

</llo_original>
